<compile_context>
chip_gen: v7x
topology: tpu7x:2x2x1
jax: 0.10.0
libtpu: 0.0.40
codegen_flags: <defaults>
</compile_context>

<pallas_src>
import functools

import jax
import jax.numpy as jnp
import numpy as np
from jax.experimental import pallas as pl
from jax.experimental.pallas import tpu as pltpu


def _round_up(x, m):
    return ((x + m - 1) // m) * m


def _adaptive_embedding_kernel(ids_ref, table_ref, out_ref):
    # ids_ref:   (TN, 1)  int32   flattened token ids for this row tile
    # table_ref: (Vp, D)  f32/bf16  combined (head | folded tails) table, VMEM resident
    # out_ref:   (TN, D)  f32
    ids = ids_ref[...]                                   # (TN, 1)
    tbl = table_ref[...]                                 # (Vp, D)
    tn = ids.shape[0]
    vp = tbl.shape[0]

    # Row gather as a one-hot MXU matmul: every valid id hits exactly one row
    # of the combined table (padded rows are zero and never selected).
    col = jax.lax.broadcasted_iota(jnp.int32, (tn, vp), 1)
    onehot = (col == ids).astype(tbl.dtype)              # (TN, Vp)
    out = jnp.dot(onehot, tbl, preferred_element_type=jnp.float32)
    out_ref[...] = out.astype(out_ref.dtype)


def adaptive_embedding(input_ids, params, *, cutoffs, num_embeddings,
                       embedding_dim, tile_rows=256,
                       table_dtype=jnp.float32):
    """Forward pass of AdaptiveEmbedding.

    input_ids: int32 (bs, sentence_length), values in [0, num_embeddings)
    returns:   float32 (bs, sentence_length, embedding_dim)
    """
    bs, sl = input_ids.shape
    D = embedding_dim

    # --- parameter-only precompute: fold each tail cluster's Embedding->Linear
    #     into one (osz, D) block and stack everything into a single table.
    pieces = [params["head"].astype(jnp.float32)]                 # (cutoffs[0], D)
    for emb, w in zip(params["tail_emb"], params["tail_proj"]):
        pieces.append(jnp.dot(emb.astype(jnp.float32),
                              w.astype(jnp.float32).T))           # (osz, hsz)@(hsz, D)
    table = jnp.concatenate(pieces, axis=0)                       # (num_embeddings, D)

    vtot = num_embeddings
    vp = _round_up(vtot, 128)                                     # lane-dense K dim
    if vp != vtot:
        table = jnp.pad(table, ((0, vp - vtot), (0, 0)))
    table = table.astype(table_dtype)

    # --- row tiling over flattened (bs * sentence_length) tokens.
    n = bs * sl
    tile = _round_up(min(tile_rows, _round_up(n, 8)), 8)
    n_pad = _round_up(n, tile)
    ids = input_ids.reshape(n, 1).astype(jnp.int32)
    if n_pad != n:
        # padded rows carry id 0 (valid head row) and are sliced off afterwards
        ids = jnp.pad(ids, ((0, n_pad - n), (0, 0)))

    grid = (n_pad // tile,)
    out = pl.pallas_call(
        _adaptive_embedding_kernel,
        out_shape=jax.ShapeDtypeStruct((n_pad, D), jnp.float32),
        grid=grid,
        in_specs=[
            pl.BlockSpec((tile, 1), lambda i: (i, 0)),     # ids tile
            pl.BlockSpec((vp, D), lambda i: (0, 0)),       # table: VMEM resident
        ],
        out_specs=pl.BlockSpec((tile, D), lambda i: (i, 0)),
        compiler_params=pltpu.CompilerParams(
            dimension_semantics=("parallel",),
            vmem_limit_bytes=64 * 1024 * 1024),
    )(ids, table)

    return out[:n].reshape(bs, sl, D)


def adaptive_embedding_ref(input_ids, params, *, cutoffs, num_embeddings,
                           embedding_dim):
    """Pure-JAX reference replicating the PyTorch forward (eval mode) exactly."""
    flat = input_ids.reshape(-1)
    out = jnp.zeros((flat.shape[0], embedding_dim), jnp.float32)
    cutoff_values = [0] + list(cutoffs) + [num_embeddings]
    for i in range(len(cutoff_values) - 1):
        low, high = cutoff_values[i], cutoff_values[i + 1]
        mask = (flat >= low) & (flat < high)
        local = jnp.where(mask, flat - low, 0)
        if i == 0:
            vals = jnp.take(params["head"], local, axis=0)
        else:
            emb = jnp.take(params["tail_emb"][i - 1], local, axis=0)
            vals = emb @ params["tail_proj"][i - 1].T
        out = jnp.where(mask[:, None], vals, out)
    return out.reshape(input_ids.shape[0], input_ids.shape[1], embedding_dim)


def make_params(key, num_embeddings, embedding_dim, cutoffs, div_value=2.0):
    cut = [0] + list(cutoffs) + [num_embeddings]
    n_clusters = len(cut) - 2
    ks = jax.random.split(key, 1 + 2 * n_clusters)
    head = jax.random.normal(ks[0], (cut[1], embedding_dim), jnp.float32) * 0.02
    tail_emb, tail_proj = [], []
    for i in range(n_clusters):
        hsz = int(embedding_dim // div_value ** (i + 1))
        osz = cut[i + 2] - cut[i + 1]
        tail_emb.append(
            jax.random.normal(ks[1 + 2 * i], (osz, hsz), jnp.float32) * 0.02)
        # torch nn.Linear(hsz, D).weight has shape (D, hsz)
        tail_proj.append(
            jax.random.normal(ks[2 + 2 * i], (embedding_dim, hsz), jnp.float32) * 0.05)
    return {"head": head, "tail_emb": tail_emb, "tail_proj": tail_proj}


if __name__ == "__main__":
    bs, sl = 2, 8
    num_embeddings = 96
    embedding_dim = 128          # multiple of 128 -> lane-dense output stores
    cutoffs = [32, 64]           # head [0,32), tail0 [32,64), tail1 [64,96)

    key = jax.random.PRNGKey(0)
    pkey, ikey = jax.random.split(key)
    params = make_params(pkey, num_embeddings, embedding_dim, cutoffs)
    ids = jax.random.randint(ikey, (bs, sl), 0, num_embeddings, dtype=jnp.int32)
    # make sure every cluster is exercised
    ids = ids.at[0, 0].set(3).at[0, 1].set(40).at[0, 2].set(70)

    fwd = jax.jit(functools.partial(
        adaptive_embedding, cutoffs=cutoffs, num_embeddings=num_embeddings,
        embedding_dim=embedding_dim, tile_rows=256))
    out = jax.block_until_ready(fwd(ids, params))

    ref = jax.block_until_ready(adaptive_embedding_ref(
        ids, params, cutoffs=cutoffs, num_embeddings=num_embeddings,
        embedding_dim=embedding_dim))
    np.testing.assert_allclose(np.asarray(out), np.asarray(ref),
                               rtol=1e-5, atol=1e-5)
    assert out.shape == (bs, sl, embedding_dim)
    print("KERNEL_OK")
</pallas_src>

<mosaic_0001>
module attributes {stable_mosaic.version = 11 : i64} {
  func.func @_adaptive_embedding_kernel(%arg0: i32, %arg1: memref<16x1xi32, #tpu.memory_space<vmem>>, %arg2: memref<128x128xf32, #tpu.memory_space<vmem>>, %arg3: memref<16x128xf32, #tpu.memory_space<vmem>>) attributes {dimension_semantics = [#tpu.dimension_semantics<parallel>], iteration_bounds = array<i64: 1>, scalar_prefetch = 0 : i64, scratch_operands = 0 : i64, tpu.core_type = #tpu.core_type<tc>, window_params = [{transform_indices = @transform_0, window_bounds = array<i64: 16, 1>}, {pipeline_mode = #tpu.pipeline_mode<synchronous>, transform_indices = @transform_1, window_bounds = array<i64: 128, 128>}, {transform_indices = @transform_2, window_bounds = array<i64: 16, 128>}]} {
    %c0 = arith.constant 0 : index
    %c0_0 = arith.constant 0 : index
    %0 = vector.load %arg1[%c0, %c0_0] : memref<16x1xi32, #tpu.memory_space<vmem>>, vector<16x1xi32>
    %c0_1 = arith.constant 0 : index
    %c0_2 = arith.constant 0 : index
    %1 = vector.load %arg2[%c0_1, %c0_2] : memref<128x128xf32, #tpu.memory_space<vmem>>, vector<128x128xf32>
    %2 = tpu.iota {dimensions = array<i32: 1>} : vector<16x128xi32>
    %3 = vector.broadcast %0 : vector<16x1xi32> to vector<16x128xi32>
    %4 = arith.cmpi eq, %2, %3 : vector<16x128xi32>
    %5 = arith.extui %4 : vector<16x128xi1> to vector<16x128xi32>
    %6 = arith.sitofp %5 : vector<16x128xi32> to vector<16x128xf32>
    %cst = arith.constant dense<0.000000e+00> : vector<16x128xf32>
    %7 = tpu.matmul %6, %1, %cst {dimension_numbers = #tpu.dot_dimension_numbers<[1], [0], [0], [1], [0, 0, 1, 1], [], []>} : vector<16x128xf32>, vector<128x128xf32>, vector<16x128xf32> -> vector<16x128xf32>
    %c0_3 = arith.constant 0 : index
    %c0_4 = arith.constant 0 : index
    %8 = vector.load %arg3[%c0_3, %c0_4] : memref<16x128xf32, #tpu.memory_space<vmem>>, vector<16x128xf32>
    tpu.vector_store %arg3[%c0_3, %c0_4], %7 {strides = array<i32>} : memref<16x128xf32, #tpu.memory_space<vmem>>, vector<16x128xf32>,
    return
  }
  func.func @transform_0(%arg0: i32) -> (i32, i32) {
    %c0_i32 = arith.constant 0 : i32
    %c0_i32_0 = arith.constant 0 : i32
    return %arg0, %c0_i32 : i32, i32
  }
  func.func @transform_1(%arg0: i32) -> (i32, i32) {
    %c0_i32 = arith.constant 0 : i32
    %c0_i32_0 = arith.constant 0 : i32
    %c0_i32_1 = arith.constant 0 : i32
    return %c0_i32, %c0_i32_0 : i32, i32
  }
  func.func @transform_2(%arg0: i32) -> (i32, i32) {
    %c0_i32 = arith.constant 0 : i32
    %c0_i32_0 = arith.constant 0 : i32
    return %arg0, %c0_i32 : i32, i32
  }
}

</mosaic_0001>

<llo_original>
// kernel: adaptive_embedding.1
$region0: #{adaptive_embedding.1}
  #allocation0 [shape = 'u32[]', space=smem, size = 0x4, offset = 0x4, fixed_abs, tag = 'smem constant byte address 0x4 - core index']
  #allocation1 [shape = 'u32[144,128]{1,0:T(1,128)}', space=vmem, size = 0x12000, scoped, tag = 'internal scratch']
  %s0 = inlined_call_operand.hbm [shape: s32[16,1], index: 0, kind: input, shape index: {}]
  %s1 = inlined_call_operand.hbm [shape: f32[128,128], index: 1, kind: input, shape index: {}]
  %s2 = inlined_call_operand.hbm [shape: f32[16,128], index: 2, kind: output, shape index: {}]
  %s3 = sld [smem:[#allocation0]]
  $region26: #{adaptive_embedding.1} parent=0
    _
  %s5 = ssub.s32 1, %s3
  %s6 = scalar_select 0, %s5, %s3
  $region1: #{adaptive_embedding.1} parent=0
    #allocation2 [shape = 'u8[8192]{0}', space=vmem, size = 0x2000, scoped, tag = 'input window, operand 0, single buffered']
    #allocation3 [shape = 's32[1]{0}', space=sflag, size = 0x4, scoped, tag = 'scoped memory for adaptive_embedding.1']
    #allocation4 [shape = 's32[1]{0}', space=sflag, size = 0x4, scoped, tag = 'scoped memory for adaptive_embedding.1']
    #allocation5 [shape = 'u8[65536]{0}', space=vmem, size = 0x10000, scoped, tag = 'input window, operand 1, single buffered']
    #allocation6 [shape = 's32[1]{0}', space=sflag, size = 0x4, scoped, tag = 'scoped memory for adaptive_embedding.1']
    #allocation7 [shape = 'u8[8192]{0}', space=vmem, size = 0x2000, scoped, tag = 'output window, operand 0, single buffered']
    %7 = vsyncpa [#allocation3], 0
    %8 = vsyncpa [#allocation6], 0
    %9 = vsyncpa [#allocation4], 0
    // Predicated region
    $region2: #{adaptive_embedding.1} parent=1 // pred_check
      _
    $region3: #{adaptive_embedding.1} parent=1 // pred_check_branch
      %11 = sbr.rel (0) target = $region5
    $region4: #{adaptive_embedding.1} parent=1 // pred_region
      %s13 = ssub.s32 256, 256
      %14 = vsyncadd [#allocation3], %s13
      %s15 = sshll.u32 [#allocation2], 4
      %s16 = int_to_ptr.vmem [resolvable:$true] %s15
      %21 = dma.hbm_to_vmem [thread:$0]  %s0, 256, %s16, [#allocation3], 128, 128, 8
    $region5: #{adaptive_embedding.1} parent=1 // pred_fallthru
      _
    // Predicated region
    $region6: #{adaptive_embedding.1} parent=1 // pred_check
      _
    $region7: #{adaptive_embedding.1} parent=1 // pred_check_branch
      %23 = sbr.rel (0) target = $region9
    $region8: #{adaptive_embedding.1} parent=1 // pred_region
      %s25 = ssub.s32 2048, 2048
      %26 = vsyncadd [#allocation6], %s25
      %s27 = sshll.u32 [#allocation5], 4
      %s28 = int_to_ptr.vmem [resolvable:$true] %s27
      %33 = dma.hbm_to_vmem [thread:$0]  %s1, 2048, %s28, [#allocation6], 128, 128, 8
    $region9: #{adaptive_embedding.1} parent=1 // pred_fallthru
      _
    // Predicated region
    $region10: #{adaptive_embedding.1} parent=1 // pred_check
      _
    $region11: #{adaptive_embedding.1} parent=1 // pred_check_branch
      %35 = sbr.rel (0) target = $region13
    $region12: #{adaptive_embedding.1} parent=1 // pred_region
      %36 = dma.done [#allocation3], 256
    $region13: #{adaptive_embedding.1} parent=1 // pred_fallthru
      _
    // Predicated region
    $region14: #{adaptive_embedding.1} parent=1 // pred_check
      _
    $region15: #{adaptive_embedding.1} parent=1 // pred_check_branch
      %38 = sbr.rel (0) target = $region17
    $region16: #{adaptive_embedding.1} parent=1 // pred_region
      %39 = dma.done [#allocation6], 2048
    $region17: #{adaptive_embedding.1} parent=1 // pred_fallthru
      _
    %v40 = vld [vmem:[#allocation2] sm:$0xff]
    %v41 = vld [vmem:[#allocation2 + $0x8] sm:$0xff]
    %v42 = vld [vmem:[#allocation5] sm:$0xff]
    %v43 = vld [vmem:[#allocation5 + $0x8] sm:$0xff]
    %v44 = vld [vmem:[#allocation5 + $0x10] sm:$0xff]
    %v45 = vld [vmem:[#allocation5 + $0x18] sm:$0xff]
    %v46 = vld [vmem:[#allocation5 + $0x20] sm:$0xff]
    %v47 = vld [vmem:[#allocation5 + $0x28] sm:$0xff]
    %v48 = vld [vmem:[#allocation5 + $0x30] sm:$0xff]
    %v49 = vld [vmem:[#allocation5 + $0x38] sm:$0xff]
    %v50 = vld [vmem:[#allocation5 + $0x40] sm:$0xff]
    %v51 = vld [vmem:[#allocation5 + $0x48] sm:$0xff]
    %v52 = vld [vmem:[#allocation5 + $0x50] sm:$0xff]
    %v53 = vld [vmem:[#allocation5 + $0x58] sm:$0xff]
    %v54 = vld [vmem:[#allocation5 + $0x60] sm:$0xff]
    %v55 = vld [vmem:[#allocation5 + $0x68] sm:$0xff]
    %v56 = vld [vmem:[#allocation5 + $0x70] sm:$0xff]
    %v57 = vld [vmem:[#allocation5 + $0x78] sm:$0xff]
    %v58 = vlaneseq
    %v59 = vand.u32 %v58, 127
    %60 = vset.pattern.permute.xlu0 0
    %61 = vperm.xlu0 %60, %v40
    %v62 = vpop.permute.xlu0 %61
    %63 = vset.pattern.permute.xlu0 0
    %64 = vperm.xlu0 %63, %v41
    %v65 = vpop.permute.xlu0 %64
    %vm66 = vcmp.eq.s32.totalorder %v59, %v62
    %vm67 = vcmp.eq.s32.totalorder %v59, %v65
    %v68 = vsel %vm66, 1, 0
    %v69 = vsel %vm67, 1, 0
    %v70 = vcvt.s32.f32 %v68
    %v71 = vcvt.s32.f32 %v69
    %72 = vmatprep.subr.mxu0 0.0
    %73 = vmatpush1.msra.mxu0 %v42
    %74 = vmatprep.subr.mxu0 0.0
    %75 = vmatpush1.msra.mxu0 %v43
    %76 = vmatprep.subr.mxu0 0.0
    %77 = vmatpush1.msra.mxu0 %v44
    %78 = vmatprep.subr.mxu0 0.0
    %79 = vmatpush1.msra.mxu0 %v45
    %80 = vmatprep.subr.mxu0 0.0
    %81 = vmatpush1.msra.mxu0 %v46
    %82 = vmatprep.subr.mxu0 0.0
    %83 = vmatpush1.msra.mxu0 %v47
    %84 = vmatprep.subr.mxu0 0.0
    %85 = vmatpush1.msra.mxu0 %v48
    %86 = vmatprep.subr.mxu0 0.0
    %87 = vmatpush1.msra.mxu0 %v49
    %88 = vmatprep.subr.mxu0 0.0
    %89 = vmatpush1.msra.mxu0 %v50
    %90 = vmatprep.subr.mxu0 0.0
    %91 = vmatpush1.msra.mxu0 %v51
    %92 = vmatprep.subr.mxu0 0.0
    %93 = vmatpush1.msra.mxu0 %v52
    %94 = vmatprep.subr.mxu0 0.0
    %95 = vmatpush1.msra.mxu0 %v53
    %96 = vmatprep.subr.mxu0 0.0
    %97 = vmatpush1.msra.mxu0 %v54
    %98 = vmatprep.subr.mxu0 0.0
    %99 = vmatpush1.msra.mxu0 %v55
    %100 = vmatprep.subr.mxu0 0.0
    %101 = vmatpush1.msra.mxu0 %v56
    %102 = vmatprep.subr.mxu0 0.0
    %103 = vmatpush1.msra.mxu0 %v57
    %104 = vmatprep.subr.mxu0 0.0
    %105 = vmatpush1.msra.mxu0 0.0
    %106 = vmatprep.subr.mxu0 0.0
    %107 = vmatpush1.msra.mxu0 0.0
    %108 = vmatprep.subr.mxu0 0.0
    %109 = vmatpush1.msra.mxu0 0.0
    %110 = vmatprep.subr.mxu0 0.0
    %111 = vmatpush1.msra.mxu0 0.0
    %112 = vmatprep.subr.mxu0 0.0
    %113 = vmatpush1.msra.mxu0 0.0
    %114 = vmatprep.subr.mxu0 0.0
    %115 = vmatpush1.msra.mxu0 0.0
    %116 = vmatprep.subr.mxu0 0.0
    %117 = vmatpush1.msra.mxu0 0.0
    %118 = vmatprep.subr.mxu0 0.0
    %119 = vmatpush1.msra.mxu0 0.0
    %120 = vmatprep.subr.mxu0 0.0
    %121 = vmatpush1.msra.mxu0 0.0
    %122 = vmatprep.subr.mxu0 0.0
    %123 = vmatpush1.msra.mxu0 0.0
    %124 = vmatprep.subr.mxu0 0.0
    %125 = vmatpush1.msra.mxu0 0.0
    %126 = vmatprep.subr.mxu0 0.0
    %127 = vmatpush1.msra.mxu0 0.0
    %128 = vmatprep.subr.mxu0 0.0
    %129 = vmatpush1.msra.mxu0 0.0
    %130 = vmatprep.subr.mxu0 0.0
    %131 = vmatpush1.msra.mxu0 0.0
    %132 = vmatprep.subr.mxu0 0.0
    %133 = vmatpush1.msra.mxu0 0.0
    %134 = vmatprep.subr.mxu0 0.0
    %135 = vmatpush1.msra.mxu0 0.0
    %136 = vmatprep.mubr.f32.mxu0 0.0
    %137 = vmatmul.mubr.f32.gmra.mrb[0].mxu0 %v70
    %v138 = vpop.f32.mrb[0].mxu0
    %v139 = vadd.f32 0.0, %v138
    %v140 = vpop.f32.mrb[0].mxu0
    %141 = vmatprep.mubr.f32.mxu0 0.0
    %142 = vmatmul.mubr.f32.gmra.mrb[0].mxu0 %v71
    %v143 = vpop.f32.mrb[0].mxu0
    %v144 = vadd.f32 0.0, %v143
    %v145 = vpop.f32.mrb[0].mxu0
    %146 = vdwg.mxu0
    %147 = vst [vmem:[#allocation7] sm:$0xff] %v139
    %148 = vst [vmem:[#allocation7 + $0x8] sm:$0xff] %v144
    // Predicated region
    $region18: #{adaptive_embedding.1} parent=1 // pred_check
      _
    $region19: #{adaptive_embedding.1} parent=1 // pred_check_branch
      %150 = sbr.rel (0) target = $region21
    $region20: #{adaptive_embedding.1} parent=1 // pred_region
      %s152 = ssub.s32 256, 256
      %153 = vsyncadd [#allocation4], %s152
      %s154 = sshll.u32 [#allocation7], 4
      %s155 = int_to_ptr.vmem [resolvable:$true] %s154
      %160 = dma.vmem_to_hbm [thread:$0]  %s155, 256, %s2, [#allocation4], 128, 128, 8
    $region21: #{adaptive_embedding.1} parent=1 // pred_fallthru
      _
    // Predicated region
    $region22: #{adaptive_embedding.1} parent=1 // pred_check
      _
    $region23: #{adaptive_embedding.1} parent=1 // pred_check_branch
      %162 = sbr.rel (0) target = $region25
    $region24: #{adaptive_embedding.1} parent=1 // pred_region
      %163 = dma.done [#allocation4], 256
    $region25: #{adaptive_embedding.1} parent=1 // pred_fallthru
      _
    %164 = vsyncpa [#allocation3], 1
    %165 = vsyncpa [#allocation6], 1
    %166 = vsyncpa [#allocation4], 1

</llo_original>
